<compile_context>
chip_gen: v6e
topology: v6e:2x2x1
jax: 0.10.0
libtpu: 0.0.40
codegen_flags: <defaults>
</compile_context>

<pallas_src>
import jax
import jax.numpy as jnp
from jax.experimental import pallas as pl
from jax.experimental.pallas import tpu as pltpu


def _resblock_kernel(x_ref, a1_ref, a2_ref, o_ref):
    """One batch element per grid step.

    x_ref : (1, H, W*Cin)       float32   input slab (also the residual source)
    a1_ref: (3*W*Cin,  W*Cmid)  bfloat16  banded conv1 weight
    a2_ref: (3*W*Cmid, W*Cout)  bfloat16  banded conv2 weight
    o_ref : (1, H, W*Cout)      float32   output slab
    """
    x = x_ref[0]                              # (H, W*Cin) f32, single VMEM read
    xb = x.astype(jnp.bfloat16)

    def row_taps(img):
        # Rows (y-1, y, y+1) of `img` concatenated along the lane axis, with
        # zero rows at the top/bottom border (the conv's dy padding).
        zero = jnp.zeros((1, img.shape[1]), img.dtype)
        up = jnp.concatenate([zero, img[:-1, :]], axis=0)     # row y-1
        down = jnp.concatenate([img[1:, :], zero], axis=0)    # row y+1
        return jnp.concatenate([up, img, down], axis=1)       # (H, 3*W*C)

    # conv1 (3x3, pad=1, no bias) + ReLU: one bf16 matmul, f32 accumulation.
    h = jnp.dot(row_taps(xb), a1_ref[...], preferred_element_type=jnp.float32)
    h = jnp.maximum(h, 0.0).astype(jnp.bfloat16)               # (H, W*Cmid)

    # conv2 (3x3, pad=1, no bias): one bf16 matmul, f32 accumulation.
    y = jnp.dot(row_taps(h), a2_ref[...], preferred_element_type=jnp.float32)

    # residual add in f32, single store of the whole (H, W*Cout) slab.
    o_ref[0] = (y + x).astype(o_ref.dtype)


def _banded_weight(w_hwio, width):
    """Fold the kx taps (and W-direction zero padding) of a 3x3 HWIO conv
    weight into a banded block-Toeplitz matrix so the conv over one image row
    is a single matmul.

    Returns (kh * width * Cin, width * Cout).  Row-block ky maps image row
    y + ky - 1 (flattened as W*Cin) to the output row (flattened as W*Cout).
    """
    kh, kw, cin, cout = w_hwio.shape
    blocks = []
    for ky in range(kh):
        a = jnp.zeros((width * cin, width * cout), w_hwio.dtype)
        for kx in range(kw):
            sel = jnp.eye(width, width, k=1 - kx, dtype=w_hwio.dtype)
            a = a + jnp.kron(sel, w_hwio[ky, kx])
        blocks.append(a)
    return jnp.concatenate(blocks, axis=0)


def resblock_pallas(x_nhwc, w1_hwio, w2_hwio):
    """x_nhwc: (N, H, W, Cin); w1: (3,3,Cin,Cmid); w2: (3,3,Cmid,Cout)."""
    N, H, W, Cin = x_nhwc.shape
    Cmid = w1_hwio.shape[3]
    Cout = w2_hwio.shape[3]
    assert Cout == Cin, "residual add requires out_channels == in_channels"

    # Free (metadata-only) reshape into the merged (H, W*C) slab layout.
    x2 = x_nhwc.reshape(N, H, W * Cin)

    # Banded weights, built once, cast to bf16 for the MXU.
    # TODO(synk): the banded weight scales with W**2; for large feature maps
    # switch back to per-tap im2col weights and add H tiling with a 1-row halo
    # so a block fits v7x's 64 MiB VMEM.
    a1 = _banded_weight(w1_hwio, W).astype(jnp.bfloat16)   # (3*W*Cin,  W*Cmid)
    a2 = _banded_weight(w2_hwio, W).astype(jnp.bfloat16)   # (3*W*Cmid, W*Cout)

    out2 = pl.pallas_call(
        _resblock_kernel,
        out_shape=jax.ShapeDtypeStruct((N, H, W * Cout), x_nhwc.dtype),
        grid_spec=pltpu.PrefetchScalarGridSpec(
            num_scalar_prefetch=0,
            grid=(N,),
            in_specs=[
                pl.BlockSpec((1, H, W * Cin), lambda n: (n, 0, 0)),
                pl.BlockSpec((3 * W * Cin, W * Cmid), lambda n: (0, 0)),
                pl.BlockSpec((3 * W * Cmid, W * Cout), lambda n: (0, 0)),
            ],
            out_specs=pl.BlockSpec((1, H, W * Cout), lambda n: (n, 0, 0)),
        ),
        compiler_params=pltpu.CompilerParams(
            dimension_semantics=("parallel",),
            vmem_limit_bytes=32 * 1024 * 1024,
        ),
    )(x2, a1, a2)

    return out2.reshape(N, H, W, Cout)


def _resblock_ref(x_nhwc, w1_hwio, w2_hwio):
    """Pure-JAX f32 reference (same math as the PyTorch module, NHWC layout)."""
    dn = jax.lax.conv_dimension_numbers(
        x_nhwc.shape, w1_hwio.shape, ("NHWC", "HWIO", "NHWC")
    )
    h = jax.lax.conv_general_dilated(
        x_nhwc, w1_hwio, window_strides=(1, 1), padding="SAME",
        dimension_numbers=dn)
    h = jnp.maximum(h, 0.0)
    y = jax.lax.conv_general_dilated(
        h, w2_hwio, window_strides=(1, 1), padding="SAME",
        dimension_numbers=dn)
    return y + x_nhwc


if __name__ == "__main__":
    # Small shapes consistent with the module's forward:
    # batch=2, in_channels=4, mid_channels=8, out_channels=4, spatial=16x16.
    N, H, W = 2, 16, 16
    Cin, Cmid, Cout = 4, 8, 4

    key = jax.random.PRNGKey(0)
    kx, k1, k2 = jax.random.split(key, 3)

    x = jax.random.normal(kx, (N, H, W, Cin), dtype=jnp.float32)
    # Conv2d weights stored as HWIO = (3, 3, in, out), no bias.
    w1 = jax.random.normal(k1, (3, 3, Cin, Cmid), dtype=jnp.float32) * 0.1
    w2 = jax.random.normal(k2, (3, 3, Cmid, Cout), dtype=jnp.float32) * 0.1

    out = jax.jit(resblock_pallas)(x, w1, w2)
    out = jax.block_until_ready(out)

    ref = _resblock_ref(x, w1, w2)
    assert out.shape == (N, H, W, Cout)
    # bf16 matmul operands with f32 accumulation -> loosened tolerance.
    assert jnp.allclose(out, ref, atol=5e-2, rtol=5e-2), "mismatch vs reference"

    print("KERNEL_OK")
</pallas_src>

<mosaic_0001>
module attributes {stable_mosaic.version = 11 : i64} {
  func.func @_resblock_kernel(%arg0: i32, %arg1: memref<1x16x64xf32, #tpu.memory_space<vmem>>, %arg2: memref<192x128xbf16, #tpu.memory_space<vmem>>, %arg3: memref<384x64xbf16, #tpu.memory_space<vmem>>, %arg4: memref<1x16x64xf32, #tpu.memory_space<vmem>>) attributes {dimension_semantics = [#tpu.dimension_semantics<parallel>], iteration_bounds = array<i64: 2>, scalar_prefetch = 0 : i64, scratch_operands = 0 : i64, tpu.core_type = #tpu.core_type<tc>, window_params = [{transform_indices = @transform_0, window_bounds = array<i64: 1, 16, 64>}, {pipeline_mode = #tpu.pipeline_mode<synchronous>, transform_indices = @transform_1, window_bounds = array<i64: 192, 128>}, {pipeline_mode = #tpu.pipeline_mode<synchronous>, transform_indices = @transform_2, window_bounds = array<i64: 384, 64>}, {transform_indices = @transform_3, window_bounds = array<i64: 1, 16, 64>}]} {
    %c0 = arith.constant 0 : index
    %c0_0 = arith.constant 0 : index
    %c0_1 = arith.constant 0 : index
    %0 = vector.load %arg1[%c0, %c0_0, %c0_1] : memref<1x16x64xf32, #tpu.memory_space<vmem>>, vector<1x16x64xf32>
    %1 = vector.shape_cast %0 : vector<1x16x64xf32> to vector<16x64xf32>
    %2 = arith.truncf %1 : vector<16x64xf32> to vector<16x64xbf16>
    %cst = arith.constant 0.000000e+00 : bf16
    %3 = vector.broadcast %cst : bf16 to vector<1x64xbf16>
    %4 = vector.extract_strided_slice %2 {offsets = [0, 0], sizes = [15, 64], strides = [1, 1]} : vector<16x64xbf16> to vector<15x64xbf16>
    %5 = tpu.concatenate %3, %4 in 0 : vector<1x64xbf16>, vector<15x64xbf16> -> vector<16x64xbf16>
    %6 = vector.extract_strided_slice %2 {offsets = [1, 0], sizes = [15, 64], strides = [1, 1]} : vector<16x64xbf16> to vector<15x64xbf16>
    %7 = tpu.concatenate %6, %3 in 0 : vector<15x64xbf16>, vector<1x64xbf16> -> vector<16x64xbf16>
    %8 = tpu.concatenate %5, %2, %7 in 1 : vector<16x64xbf16>, vector<16x64xbf16>, vector<16x64xbf16> -> vector<16x192xbf16>
    %c0_2 = arith.constant 0 : index
    %c0_3 = arith.constant 0 : index
    %9 = vector.load %arg2[%c0_2, %c0_3] : memref<192x128xbf16, #tpu.memory_space<vmem>>, vector<192x128xbf16>
    %cst_4 = arith.constant dense<0.000000e+00> : vector<16x128xf32>
    %10 = tpu.matmul %8, %9, %cst_4 {dimension_numbers = #tpu.dot_dimension_numbers<[1], [0], [0], [1], [0, 0, 1, 1], [], []>} : vector<16x192xbf16>, vector<192x128xbf16>, vector<16x128xf32> -> vector<16x128xf32>
    %cst_5 = arith.constant 0.000000e+00 : f32
    %11 = vector.broadcast %cst_5 : f32 to vector<16x128xf32>
    %12 = arith.maximumf %10, %11 : vector<16x128xf32>
    %13 = arith.truncf %12 : vector<16x128xf32> to vector<16x128xbf16>
    %cst_6 = arith.constant 0.000000e+00 : bf16
    %14 = vector.broadcast %cst_6 : bf16 to vector<1x128xbf16>
    %15 = vector.extract_strided_slice %13 {offsets = [0, 0], sizes = [15, 128], strides = [1, 1]} : vector<16x128xbf16> to vector<15x128xbf16>
    %16 = tpu.concatenate %14, %15 in 0 : vector<1x128xbf16>, vector<15x128xbf16> -> vector<16x128xbf16>
    %17 = vector.extract_strided_slice %13 {offsets = [1, 0], sizes = [15, 128], strides = [1, 1]} : vector<16x128xbf16> to vector<15x128xbf16>
    %18 = tpu.concatenate %17, %14 in 0 : vector<15x128xbf16>, vector<1x128xbf16> -> vector<16x128xbf16>
    %19 = tpu.concatenate %16, %13, %18 in 1 : vector<16x128xbf16>, vector<16x128xbf16>, vector<16x128xbf16> -> vector<16x384xbf16>
    %c0_7 = arith.constant 0 : index
    %c0_8 = arith.constant 0 : index
    %20 = vector.load %arg3[%c0_7, %c0_8] : memref<384x64xbf16, #tpu.memory_space<vmem>>, vector<384x64xbf16>
    %cst_9 = arith.constant dense<0.000000e+00> : vector<16x64xf32>
    %21 = tpu.matmul %19, %20, %cst_9 {dimension_numbers = #tpu.dot_dimension_numbers<[1], [0], [0], [1], [0, 0, 1, 1], [], []>} : vector<16x384xbf16>, vector<384x64xbf16>, vector<16x64xf32> -> vector<16x64xf32>
    %22 = arith.addf %21, %1 : vector<16x64xf32>
    %c0_10 = arith.constant 0 : index
    %c0_11 = arith.constant 0 : index
    %c0_12 = arith.constant 0 : index
    %23 = vector.load %arg4[%c0_10, %c0_11, %c0_12] : memref<1x16x64xf32, #tpu.memory_space<vmem>>, vector<1x16x64xf32>
    %24 = vector.shape_cast %23 : vector<1x16x64xf32> to vector<16x64xf32>
    %25 = vector.shape_cast %22 : vector<16x64xf32> to vector<1x16x64xf32>
    tpu.vector_store %arg4[%c0_10, %c0_11, %c0_12], %25 {strides = array<i32>} : memref<1x16x64xf32, #tpu.memory_space<vmem>>, vector<1x16x64xf32>,
    return
  }
  func.func @transform_0(%arg0: i32) -> (i32, i32, i32) {
    %c0_i32 = arith.constant 0 : i32
    %c0_i32_0 = arith.constant 0 : i32
    %c0_i32_1 = arith.constant 0 : i32
    return %arg0, %c0_i32, %c0_i32_0 : i32, i32, i32
  }
  func.func @transform_1(%arg0: i32) -> (i32, i32) {
    %c0_i32 = arith.constant 0 : i32
    %c0_i32_0 = arith.constant 0 : i32
    %c0_i32_1 = arith.constant 0 : i32
    return %c0_i32, %c0_i32_0 : i32, i32
  }
  func.func @transform_2(%arg0: i32) -> (i32, i32) {
    %c0_i32 = arith.constant 0 : i32
    %c0_i32_0 = arith.constant 0 : i32
    %c0_i32_1 = arith.constant 0 : i32
    return %c0_i32, %c0_i32_0 : i32, i32
  }
  func.func @transform_3(%arg0: i32) -> (i32, i32, i32) {
    %c0_i32 = arith.constant 0 : i32
    %c0_i32_0 = arith.constant 0 : i32
    %c0_i32_1 = arith.constant 0 : i32
    return %arg0, %c0_i32, %c0_i32_0 : i32, i32, i32
  }
}

</mosaic_0001>

<llo_original>
// kernel: resblock_pallas.1
$region0: #{resblock_pallas.1}
  #allocation0 [shape = 'u32[]', space=smem, size = 0x4, offset = 0x4, fixed_abs, tag = 'smem constant byte address 0x4 - core index']
  #allocation1 [shape = 'u32[144,128]{1,0:T(1,128)}', space=vmem, size = 0x12000, scoped, tag = 'internal scratch']
  %s0 = inlined_call_operand.vmem [shape: f32[2,16,64], index: 0, kind: input, shape index: {}]
  %s1 = inlined_call_operand.vmem [shape: bf16[192,128], index: 1, kind: input, shape index: {}]
  %s2 = inlined_call_operand.vmem [shape: bf16[384,64], index: 2, kind: input, shape index: {}]
  %s3 = inlined_call_operand.vmem [shape: f32[2,16,64], index: 3, kind: output, shape index: {}]
  %s4 = sld [smem:[#allocation0]]
  $region45: #{resblock_pallas.1} parent=0
    _
  %s6 = ssub.s32 1, %s4
  %s7 = scalar_select 0, %s6, %s4
  loop: start=0, step=1, limit=4
  $region2: #{resblock_pallas.1} parent=0 // loop_pre_header
    _
  $region3: #{resblock_pallas.1} parent=0 // loop_header
    %s9 = sphi 0, %s13
    %p10 = scmp.ge.s32.totalorder %s9, 4
    %s19 = sphi 0, %s21
    %s22 = sphi 0, %s19
    %s23 = sphi 0, %s22
    %s39 = sphi 0, %s23
    %s43 = sphi 0, %s43
    %s45 = sphi 0, %s43
    %s46 = sphi 0, %s45
    %s60 = sphi 0, %s46
    %s64 = sphi 0, %s64
    %s66 = sphi 0, %s64
    %s67 = sphi 0, %s66
    %s81 = sphi 0, %s67
    %s87 = sphi 0, %s89
    %s90 = sphi 0, %s87
    %s91 = sphi 0, %s90
    %s107 = sphi 0, %s91
  $region4: #{resblock_pallas.1} parent=0 // loop_header_branch
    %12 = sbr.rel (%p10) target = $region8
  $region5: #{resblock_pallas.1} parent=0 // loop_body
    %s14 = ssub.s32 %s9, 1
    %s15 = ssub.s32 %s9, 2
    %s16 = sadd.s32 %s9, 1
    %s17 = ssub.s32 %s9, %s16
    %p18 = scmp.eq.s32.totalorder %s17, 0
    %s20 = sadd.s32 %s19, 1
    %s21 = scalar_select %p18, %s19, %s20
    %p24 = pneg %p18
    %p25 = scmp.eq.s32.totalorder %s9, 1
    %p26 = por %p24, %p25
    %p27 = scmp.ne.s32.totalorder %s19, %s22
    %p28 = scmp.eq.s32.totalorder %s9, 0
    %p29 = por %p27, %p28
    %p30 = scmp.ne.s32.totalorder %s19, %s22
    %p31 = scmp.eq.s32.totalorder %s14, 1
    %p32 = por %p30, %p31
    %p33 = scmp.ne.s32.totalorder %s22, %s23
    %p34 = scmp.eq.s32.totalorder %s14, 0
    %p35 = por %p33, %p34
    %p36 = scmp.ne.s32.totalorder %s22, %s23
    %p37 = scmp.eq.s32.totalorder %s15, 1
    %p38 = por %p36, %p37
    %p40 = scmp.ne.s32.totalorder %s23, %s39
    %p41 = scmp.eq.s32.totalorder %s15, 0
    %p42 = por %p40, %p41
    %s44 = sadd.s32 %s43, 1
    %p47 = scmp.eq.s32.totalorder %s9, 1
    %p48 = scmp.ne.s32.totalorder %s43, %s45
    %p49 = scmp.eq.s32.totalorder %s9, 0
    %p50 = por %p48, %p49
    %p51 = scmp.ne.s32.totalorder %s43, %s45
    %p52 = scmp.eq.s32.totalorder %s14, 1
    %p53 = por %p51, %p52
    %p54 = scmp.ne.s32.totalorder %s45, %s46
    %p55 = scmp.eq.s32.totalorder %s14, 0
    %p56 = por %p54, %p55
    %p57 = scmp.ne.s32.totalorder %s45, %s46
    %p58 = scmp.eq.s32.totalorder %s15, 1
    %p59 = por %p57, %p58
    %p61 = scmp.ne.s32.totalorder %s46, %s60
    %p62 = scmp.eq.s32.totalorder %s15, 0
    %p63 = por %p61, %p62
    %s65 = sadd.s32 %s64, 1
    %p68 = scmp.eq.s32.totalorder %s9, 1
    %p69 = scmp.ne.s32.totalorder %s64, %s66
    %p70 = scmp.eq.s32.totalorder %s9, 0
    %p71 = por %p69, %p70
    %p72 = scmp.ne.s32.totalorder %s64, %s66
    %p73 = scmp.eq.s32.totalorder %s14, 1
    %p74 = por %p72, %p73
    %p75 = scmp.ne.s32.totalorder %s66, %s67
    %p76 = scmp.eq.s32.totalorder %s14, 0
    %p77 = por %p75, %p76
    %p78 = scmp.ne.s32.totalorder %s66, %s67
    %p79 = scmp.eq.s32.totalorder %s15, 1
    %p80 = por %p78, %p79
    %p82 = scmp.ne.s32.totalorder %s67, %s81
    %p83 = scmp.eq.s32.totalorder %s15, 0
    %p84 = por %p82, %p83
    %s85 = ssub.s32 %s9, %s16
    %p86 = scmp.eq.s32.totalorder %s85, 0
    %s88 = sadd.s32 %s87, 1
    %s89 = scalar_select %p86, %s87, %s88
    %p92 = pneg %p86
    %p93 = scmp.eq.s32.totalorder %s9, 1
    %p94 = por %p92, %p93
    %p95 = scmp.ne.s32.totalorder %s87, %s90
    %p96 = scmp.eq.s32.totalorder %s9, 0
    %p97 = por %p95, %p96
    %p98 = scmp.ne.s32.totalorder %s87, %s90
    %p99 = scmp.eq.s32.totalorder %s14, 1
    %p100 = por %p98, %p99
    %p101 = scmp.ne.s32.totalorder %s90, %s91
    %p102 = scmp.eq.s32.totalorder %s14, 0
    %p103 = por %p101, %p102
    %p104 = scmp.ne.s32.totalorder %s90, %s91
    %p105 = scmp.eq.s32.totalorder %s15, 1
    %p106 = por %p104, %p105
    %p108 = scmp.ne.s32.totalorder %s91, %s107
    %p109 = scmp.eq.s32.totalorder %s15, 0
    %p110 = por %p108, %p109
    %p111 = scmp.le.s32.totalorder 1, %s9
    %p112 = scmp.lt.s32.totalorder %s9, 3
    %p113 = pnand %p111, %p112
    %p114 = pneg %p113
    // Predicated region
    $region9: #{resblock_pallas.1} parent=5 // pred_check
      _
    $region10: #{resblock_pallas.1} parent=5 // pred_check_branch
      %116 = sbr.rel (%p113) target = $region12
    $region11: #{resblock_pallas.1} parent=5 // pred_region
      %s117 = ssub.s32 %s9, 1
      // Predicated region
      $region13: #{resblock_pallas.1} parent=11 // pred_check
        %p118 = pneg %p56
      $region14: #{resblock_pallas.1} parent=11 // pred_check_branch
        %120 = sbr.rel (%p118) target = $region16
      $region15: #{resblock_pallas.1} parent=11 // pred_region
        _
      $region16: #{resblock_pallas.1} parent=11 // pred_fallthru
        _
      // Predicated region
      $region17: #{resblock_pallas.1} parent=11 // pred_check
        %p121 = pneg %p77
      $region18: #{resblock_pallas.1} parent=11 // pred_check_branch
        %123 = sbr.rel (%p121) target = $region20
      $region19: #{resblock_pallas.1} parent=11 // pred_region
        _
      $region20: #{resblock_pallas.1} parent=11 // pred_fallthru
        _
    $region12: #{resblock_pallas.1} parent=5 // pred_fallthru
      _
    %p124 = scmp.lt.s32.totalorder %s9, 2
    // Predicated region
    $region21: #{resblock_pallas.1} parent=5 // pred_check
      %p125 = pneg %p124
    $region22: #{resblock_pallas.1} parent=5 // pred_check_branch
      %127 = sbr.rel (%p125) target = $region24
    $region23: #{resblock_pallas.1} parent=5 // pred_region
      // Predicated region
      $region25: #{resblock_pallas.1} parent=23 // pred_check
        %p128 = pneg %p29
      $region26: #{resblock_pallas.1} parent=23 // pred_check_branch
        %130 = sbr.rel (%p128) target = $region28
      $region27: #{resblock_pallas.1} parent=23 // pred_region
        %p131 = scmp.lt.s32.totalorder %s9, 1
        %s132 = scalar_select %p131, %s9, 1
        %s133 = smul.addr %s132, 2
        %s134 = smul.addr %s133, 8
        %s135 = scalar_lea.vmem %s0, %s134
      $region28: #{resblock_pallas.1} parent=23 // pred_fallthru
        _
    $region24: #{resblock_pallas.1} parent=5 // pred_fallthru
      _
    %p136 = scmp.le.s32.totalorder 1, %s9
    %p137 = scmp.lt.s32.totalorder %s9, 3
    %p138 = pnand %p136, %p137
    %p139 = pneg %p138
    // Predicated region
    $region29: #{resblock_pallas.1} parent=5 // pred_check
      _
    $region30: #{resblock_pallas.1} parent=5 // pred_check_branch
      %141 = sbr.rel (%p138) target = $region32
    $region31: #{resblock_pallas.1} parent=5 // pred_region
      %s142 = ssub.s32 %s9, 1
      %p143 = scmp.lt.s32.totalorder %s14, 1
      %s144 = scalar_select %p143, %s14, 1
      %s145 = smul.addr %s144, 2
      %s146 = smul.addr %s145, 8
      %s147 = scalar_lea.vmem %s0, %s146
      %p148 = pneg %p35
      %p149 = pneg %p32
      %p150 = pneg %p56
      %p151 = pneg %p53
      %p152 = pneg %p77
      %p153 = pneg %p74
      %p154 = pneg %p103
      %p155 = pneg %p100
      %p156 = scmp.lt.s32.totalorder %s14, 1
      %s157 = scalar_select %p156, %s14, 1
      %s158 = smul.addr %s157, 2
      %s159 = smul.addr %s158, 8
      %s160 = scalar_lea.vmem %s3, %s159
      %p161 = scmp.lt.s32.totalorder %s14, 1
      %s162 = scalar_select %p161, %s14, 1
      %s163 = smul.addr %s162, 2
      %s164 = smul.addr %s163, 8
      %s165 = scalar_lea.vmem %s0, %s164
      %p166 = scmp.lt.s32.totalorder %s14, 1
      %s167 = scalar_select %p166, %s14, 1
      %s168 = smul.addr %s167, 2
      %s169 = smul.addr %s168, 8
      %s170 = scalar_lea.vmem %s3, %s169
      %v172 = vld [vmem:[%s165] sm:$0xff]
      %v173 = vld [vmem:[%s165 + $0x8] sm:$0xff]
      %v174 = vpack.c.bf16 %v173, %v172
      %v176 = vshrl.u32 %v174, 16
      %v178 = vrot.slane %v176, 7
      %v179 = vshll.u32 %v174, 16
      %v181 = vor.u32 %v178, %v179
      %vm183 = vcmask 1040384
      %vm184 = vsmask.f32 256
      %vm185 = vmand %vm183, %vm184
      %v186 = vsel %vm185, 0, %v181
      %v187 = vrot.slane %v179, 1
      %v188 = vor.u32 %v176, %v187
      %vm190 = vcmask 1047552
      %vm191 = vsmask.f32 7424
      %vm192 = vmand %vm190, %vm191
      %v193 = vsel %vm192, %v188, 0
      %195 = vrot.lane.b32.xlu0 %v174, 64
      %v196 = vpop.permute.xlu0 %195
      %vm197 = vcmask 523264
      %v200 = vsel %vm197, %v186, %v196
      %v202 = vld [vmem:[%s1] sm:$0xf]
      %v203 = vld [vmem:[%s1 + $0x4] sm:$0xf]
      %v204 = vld [vmem:[%s1 + $0x8] sm:$0xf]
      %v205 = vld [vmem:[%s1 + $0xc] sm:$0xf]
      %v206 = vld [vmem:[%s1 + $0x10] sm:$0xf]
      %v207 = vld [vmem:[%s1 + $0x14] sm:$0xf]
      %v208 = vld [vmem:[%s1 + $0x18] sm:$0xf]
      %v209 = vld [vmem:[%s1 + $0x1c] sm:$0xf]
      %v210 = vld [vmem:[%s1 + $0x20] sm:$0xf]
      %v211 = vld [vmem:[%s1 + $0x24] sm:$0xf]
      %v212 = vld [vmem:[%s1 + $0x28] sm:$0xf]
      %v213 = vld [vmem:[%s1 + $0x2c] sm:$0xf]
      %v214 = vld [vmem:[%s1 + $0x30] sm:$0xf]
      %v215 = vld [vmem:[%s1 + $0x34] sm:$0xf]
      %v216 = vld [vmem:[%s1 + $0x38] sm:$0xf]
      %v217 = vld [vmem:[%s1 + $0x3c] sm:$0xf]
      %v218 = vld [vmem:[%s1 + $0x40] sm:$0xf]
      %v219 = vld [vmem:[%s1 + $0x44] sm:$0xf]
      %v220 = vld [vmem:[%s1 + $0x48] sm:$0xf]
      %v221 = vld [vmem:[%s1 + $0x4c] sm:$0xf]
      %v222 = vld [vmem:[%s1 + $0x50] sm:$0xf]
      %v223 = vld [vmem:[%s1 + $0x54] sm:$0xf]
      %v224 = vld [vmem:[%s1 + $0x58] sm:$0xf]
      %v225 = vld [vmem:[%s1 + $0x5c] sm:$0xf]
      %v250 = vunpack.c.l.b16 %v202
      %v251 = vunpack.c.l.b16 %v203
      %v252 = vunpack.c.l.b16 %v204
      %v253 = vunpack.c.l.b16 %v205
      %v254 = vunpack.c.l.b16 %v206
      %v255 = vunpack.c.l.b16 %v207
      %v256 = vunpack.c.l.b16 %v208
      %v257 = vunpack.c.l.b16 %v209
      %v258 = vunpack.c.l.b16 %v210
      %v259 = vunpack.c.l.b16 %v211
      %v260 = vunpack.c.l.b16 %v212
      %v261 = vunpack.c.l.b16 %v213
      %v262 = vunpack.c.l.b16 %v214
      %v263 = vunpack.c.l.b16 %v215
      %v264 = vunpack.c.l.b16 %v216
      %v265 = vunpack.c.l.b16 %v217
      %v266 = vunpack.c.l.b16 %v218
      %v267 = vunpack.c.l.b16 %v219
      %v268 = vunpack.c.l.b16 %v220
      %v269 = vunpack.c.l.b16 %v221
      %v270 = vunpack.c.l.b16 %v222
      %v271 = vunpack.c.l.b16 %v223
      %v272 = vunpack.c.l.b16 %v224
      %v273 = vunpack.c.l.b16 %v225
      %v274 = vpack.c.b16 %v251, %v250
      %v275 = vpack.c.b16 %v253, %v252
      %v276 = vpack.c.b16 %v255, %v254
      %v277 = vpack.c.b16 %v257, %v256
      %v278 = vpack.c.b16 %v259, %v258
      %v279 = vpack.c.b16 %v261, %v260
      %v280 = vpack.c.b16 %v263, %v262
      %v281 = vpack.c.b16 %v265, %v264
      %v282 = vpack.c.b16 %v267, %v266
      %v283 = vpack.c.b16 %v269, %v268
      %v284 = vpack.c.b16 %v271, %v270
      %v285 = vpack.c.b16 %v273, %v272
      %v299 = vsel %vm197, %v193, 0
      %301 = vmatprep.subr.bf16.mxu0 0
      %302 = vmatpush1.bf16.msra.mxu0 %v281
      %303 = vmatprep.subr.bf16.mxu0 0
      %304 = vmatpush1.bf16.msra.mxu0 %v280
      %305 = vmatprep.subr.bf16.mxu0 0
      %306 = vmatpush1.bf16.msra.mxu0 %v279
      %307 = vmatprep.subr.bf16.mxu0 0
      %308 = vmatpush1.bf16.msra.mxu0 %v278
      %309 = vmatprep.subr.bf16.mxu0 0
      %310 = vmatpush1.bf16.msra.mxu0 %v277
      %311 = vmatprep.subr.bf16.mxu0 0
      %312 = vmatpush1.bf16.msra.mxu0 %v276
      %313 = vmatprep.subr.bf16.mxu0 0
      %314 = vmatpush1.bf16.msra.mxu0 %v275
      %315 = vmatprep.subr.bf16.mxu0 0
      %316 = vmatpush1.bf16.msra.mxu0 %v274
      %317 = vmatprep.subr.bf16.mxu0 0
      %318 = vmatpush2.bf16.msra.mxu0 0
      %319 = vmatprep.subr.bf16.mxu0 0
      %320 = vmatpush2.bf16.msra.mxu0 0
      %321 = vmatprep.subr.bf16.mxu0 0
      %322 = vmatpush2.bf16.msra.mxu0 0
      %323 = vmatprep.subr.bf16.mxu0 0
      %324 = vmatpush2.bf16.msra.mxu0 0
      %325 = vmatprep.subr.bf16.mxu0 0
      %326 = vmatpush2.bf16.msra.mxu0 %v285
      %327 = vmatprep.subr.bf16.mxu0 0
      %328 = vmatpush2.bf16.msra.mxu0 %v284
      %329 = vmatprep.subr.bf16.mxu0 0
      %330 = vmatpush2.bf16.msra.mxu0 %v283
      %331 = vmatprep.subr.bf16.mxu0 0
      %332 = vmatpush2.bf16.msra.mxu0 %v282
      %333 = vmatprep.mubr.bf16.mxu0 %v299
      %334 = vmatmul.mubr.bf16.gmra.mxu0 %v200
      %v335 = vpop.f32.mrf.mxu0
      %v336 = vadd.f32 0.0, %v335
      %v337 = vpop.f32.mrf.mxu0
      %v338 = vpop.f32.mrf.mxu0
      %v339 = vadd.f32 0.0, %v338
      %v340 = vpop.f32.mrf.mxu0
      %341 = vdwg.mxu0
      %v342 = vmax.f32 %v336, 0.0
      %v343 = vmax.f32 %v339, 0.0
      %v344 = vpack.c.bf16 %v343, %v342
      %v346 = vshrl.u32 %v344, 16
      %v348 = vrot.slane %v346, 7
      %v349 = vshll.u32 %v344, 16
      %v351 = vor.u32 %v348, %v349
      %v353 = vsel %vm185, 0, %v351
      %v354 = vrot.slane %v349, 1
      %v355 = vor.u32 %v346, %v354
      %v357 = vsel %vm192, %v355, 0
      %v358 = vld [vmem:[%s2] sm:$0xf]
      %v359 = vld [vmem:[%s2 + $0x4] sm:$0xf]
      %v360 = vld [vmem:[%s2 + $0x8] sm:$0xf]
      %v361 = vld [vmem:[%s2 + $0xc] sm:$0xf]
      %v362 = vld [vmem:[%s2 + $0x10] sm:$0xf]
      %v363 = vld [vmem:[%s2 + $0x14] sm:$0xf]
      %v364 = vld [vmem:[%s2 + $0x18] sm:$0xf]
      %v365 = vld [vmem:[%s2 + $0x1c] sm:$0xf]
      %v366 = vld [vmem:[%s2 + $0x20] sm:$0xf]
      %v367 = vld [vmem:[%s2 + $0x24] sm:$0xf]
      %v368 = vld [vmem:[%s2 + $0x28] sm:$0xf]
      %v369 = vld [vmem:[%s2 + $0x2c] sm:$0xf]
      %v370 = vld [vmem:[%s2 + $0x30] sm:$0xf]
      %v371 = vld [vmem:[%s2 + $0x34] sm:$0xf]
      %v372 = vld [vmem:[%s2 + $0x38] sm:$0xf]
      %v373 = vld [vmem:[%s2 + $0x3c] sm:$0xf]
      %v374 = vld [vmem:[%s2 + $0x40] sm:$0xf]
      %v375 = vld [vmem:[%s2 + $0x44] sm:$0xf]
      %v376 = vld [vmem:[%s2 + $0x48] sm:$0xf]
      %v377 = vld [vmem:[%s2 + $0x4c] sm:$0xf]
      %v378 = vld [vmem:[%s2 + $0x50] sm:$0xf]
      %v379 = vld [vmem:[%s2 + $0x54] sm:$0xf]
      %v380 = vld [vmem:[%s2 + $0x58] sm:$0xf]
      %v381 = vld [vmem:[%s2 + $0x5c] sm:$0xf]
      %v382 = vld [vmem:[%s2 + $0x60] sm:$0xf]
      %v383 = vld [vmem:[%s2 + $0x64] sm:$0xf]
      %v384 = vld [vmem:[%s2 + $0x68] sm:$0xf]
      %v385 = vld [vmem:[%s2 + $0x6c] sm:$0xf]
      %v386 = vld [vmem:[%s2 + $0x70] sm:$0xf]
      %v387 = vld [vmem:[%s2 + $0x74] sm:$0xf]
      %v388 = vld [vmem:[%s2 + $0x78] sm:$0xf]
      %v389 = vld [vmem:[%s2 + $0x7c] sm:$0xf]
      %v390 = vld [vmem:[%s2 + $0x80] sm:$0xf]
      %v391 = vld [vmem:[%s2 + $0x84] sm:$0xf]
      %v392 = vld [vmem:[%s2 + $0x88] sm:$0xf]
      %v393 = vld [vmem:[%s2 + $0x8c] sm:$0xf]
      %v394 = vld [vmem:[%s2 + $0x90] sm:$0xf]
      %v395 = vld [vmem:[%s2 + $0x94] sm:$0xf]
      %v396 = vld [vmem:[%s2 + $0x98] sm:$0xf]
      %v397 = vld [vmem:[%s2 + $0x9c] sm:$0xf]
      %v398 = vld [vmem:[%s2 + $0xa0] sm:$0xf]
      %v399 = vld [vmem:[%s2 + $0xa4] sm:$0xf]
      %v400 = vld [vmem:[%s2 + $0xa8] sm:$0xf]
      %v401 = vld [vmem:[%s2 + $0xac] sm:$0xf]
      %v402 = vld [vmem:[%s2 + $0xb0] sm:$0xf]
      %v403 = vld [vmem:[%s2 + $0xb4] sm:$0xf]
      %v404 = vld [vmem:[%s2 + $0xb8] sm:$0xf]
      %v405 = vld [vmem:[%s2 + $0xbc] sm:$0xf]
      %v454 = vunpack.c.l.b16 %v358
      %v455 = vunpack.c.l.b16 %v359
      %v456 = vunpack.c.l.b16 %v360
      %v457 = vunpack.c.l.b16 %v361
      %v458 = vunpack.c.l.b16 %v362
      %v459 = vunpack.c.l.b16 %v363
      %v460 = vunpack.c.l.b16 %v364
      %v461 = vunpack.c.l.b16 %v365
      %v462 = vunpack.c.l.b16 %v366
      %v463 = vunpack.c.l.b16 %v367
      %v464 = vunpack.c.l.b16 %v368
      %v465 = vunpack.c.l.b16 %v369
      %v466 = vunpack.c.l.b16 %v370
      %v467 = vunpack.c.l.b16 %v371
      %v468 = vunpack.c.l.b16 %v372
      %v469 = vunpack.c.l.b16 %v373
      %v470 = vunpack.c.l.b16 %v374
      %v471 = vunpack.c.l.b16 %v375
      %v472 = vunpack.c.l.b16 %v376
      %v473 = vunpack.c.l.b16 %v377
      %v474 = vunpack.c.l.b16 %v378
      %v475 = vunpack.c.l.b16 %v379
      %v476 = vunpack.c.l.b16 %v380
      %v477 = vunpack.c.l.b16 %v381
      %v478 = vunpack.c.l.b16 %v382
      %v479 = vunpack.c.l.b16 %v383
      %v480 = vunpack.c.l.b16 %v384
      %v481 = vunpack.c.l.b16 %v385
      %v482 = vunpack.c.l.b16 %v386
      %v483 = vunpack.c.l.b16 %v387
      %v484 = vunpack.c.l.b16 %v388
      %v485 = vunpack.c.l.b16 %v389
      %v486 = vunpack.c.l.b16 %v390
      %v487 = vunpack.c.l.b16 %v391
      %v488 = vunpack.c.l.b16 %v392
      %v489 = vunpack.c.l.b16 %v393
      %v490 = vunpack.c.l.b16 %v394
      %v491 = vunpack.c.l.b16 %v395
      %v492 = vunpack.c.l.b16 %v396
      %v493 = vunpack.c.l.b16 %v397
      %v494 = vunpack.c.l.b16 %v398
      %v495 = vunpack.c.l.b16 %v399
      %v496 = vunpack.c.l.b16 %v400
      %v497 = vunpack.c.l.b16 %v401
      %v498 = vunpack.c.l.b16 %v402
      %v499 = vunpack.c.l.b16 %v403
      %v500 = vunpack.c.l.b16 %v404
      %v501 = vunpack.c.l.b16 %v405
      %v502 = vpack.c.b16 %v455, %v454
      %v503 = vpack.c.b16 %v457, %v456
      %v504 = vpack.c.b16 %v459, %v458
      %v505 = vpack.c.b16 %v461, %v460
      %v506 = vpack.c.b16 %v463, %v462
      %v507 = vpack.c.b16 %v465, %v464
      %v508 = vpack.c.b16 %v467, %v466
      %v509 = vpack.c.b16 %v469, %v468
      %v510 = vpack.c.b16 %v471, %v470
      %v511 = vpack.c.b16 %v473, %v472
      %v512 = vpack.c.b16 %v475, %v474
      %v513 = vpack.c.b16 %v477, %v476
      %v514 = vpack.c.b16 %v479, %v478
      %v515 = vpack.c.b16 %v481, %v480
      %v516 = vpack.c.b16 %v483, %v482
      %v517 = vpack.c.b16 %v485, %v484
      %v518 = vpack.c.b16 %v487, %v486
      %v519 = vpack.c.b16 %v489, %v488
      %v520 = vpack.c.b16 %v491, %v490
      %v521 = vpack.c.b16 %v493, %v492
      %v522 = vpack.c.b16 %v495, %v494
      %v523 = vpack.c.b16 %v497, %v496
      %v524 = vpack.c.b16 %v499, %v498
      %v525 = vpack.c.b16 %v501, %v500
      %550 = vmatprep.subr.bf16.mxu0 0
      %551 = vmatpush1.bf16.msra.mxu0 %v509
      %552 = vmatprep.subr.bf16.mxu0 0
      %553 = vmatpush1.bf16.msra.mxu0 %v508
      %554 = vmatprep.subr.bf16.mxu0 0
      %555 = vmatpush1.bf16.msra.mxu0 %v507
      %556 = vmatprep.subr.bf16.mxu0 0
      %557 = vmatpush1.bf16.msra.mxu0 %v506
      %558 = vmatprep.subr.bf16.mxu0 0
      %559 = vmatpush1.bf16.msra.mxu0 %v505
      %560 = vmatprep.subr.bf16.mxu0 0
      %561 = vmatpush1.bf16.msra.mxu0 %v504
      %562 = vmatprep.subr.bf16.mxu0 0
      %563 = vmatpush1.bf16.msra.mxu0 %v503
      %564 = vmatprep.subr.bf16.mxu0 0
      %565 = vmatpush1.bf16.msra.mxu0 %v502
      %566 = vmatprep.subr.bf16.mxu0 0
      %567 = vmatpush2.bf16.msra.mxu0 %v517
      %568 = vmatprep.subr.bf16.mxu0 0
      %569 = vmatpush2.bf16.msra.mxu0 %v516
      %570 = vmatprep.subr.bf16.mxu0 0
      %571 = vmatpush2.bf16.msra.mxu0 %v515
      %572 = vmatprep.subr.bf16.mxu0 0
      %573 = vmatpush2.bf16.msra.mxu0 %v514
      %574 = vmatprep.subr.bf16.mxu0 0
      %575 = vmatpush2.bf16.msra.mxu0 %v513
      %576 = vmatprep.subr.bf16.mxu0 0
      %577 = vmatpush2.bf16.msra.mxu0 %v512
      %578 = vmatprep.subr.bf16.mxu0 0
      %579 = vmatpush2.bf16.msra.mxu0 %v511
      %580 = vmatprep.subr.bf16.mxu0 0
      %581 = vmatpush2.bf16.msra.mxu0 %v510
      %582 = vmatprep.mubr.bf16.mxu0 %v344
      %583 = vmatmul.mubr.bf16.gmra.mxu0 %v353
      %v584 = vpop.f32.mrf.mxu0
      %v585 = vadd.f32 %v172, %v584
      %v586 = vpop.f32.mrf.mxu0
      %v587 = vpop.f32.mrf.mxu0
      %v588 = vadd.f32 %v173, %v587
      %v589 = vpop.f32.mrf.mxu0
      %590 = vdwg.mxu0
      %591 = vmatprep.subr.bf16.mxu0 0
      %592 = vmatpush1.bf16.msra.mxu0 %v525
      %593 = vmatprep.subr.bf16.mxu0 0
      %594 = vmatpush1.bf16.msra.mxu0 %v524
      %595 = vmatprep.subr.bf16.mxu0 0
      %596 = vmatpush1.bf16.msra.mxu0 %v523
      %597 = vmatprep.subr.bf16.mxu0 0
      %598 = vmatpush1.bf16.msra.mxu0 %v522
      %599 = vmatprep.subr.bf16.mxu0 0
      %600 = vmatpush1.bf16.msra.mxu0 %v521
      %601 = vmatprep.subr.bf16.mxu0 0
      %602 = vmatpush1.bf16.msra.mxu0 %v520
      %603 = vmatprep.subr.bf16.mxu0 0
      %604 = vmatpush1.bf16.msra.mxu0 %v519
      %605 = vmatprep.subr.bf16.mxu0 0
      %606 = vmatpush1.bf16.msra.mxu0 %v518
      %607 = vmatprep.subr.bf16.mxu0 0
      %608 = vmatpush2.bf16.msra.mxu0 0
      %609 = vmatprep.subr.bf16.mxu0 0
      %610 = vmatpush2.bf16.msra.mxu0 0
      %611 = vmatprep.subr.bf16.mxu0 0
      %612 = vmatpush2.bf16.msra.mxu0 0
      %613 = vmatprep.subr.bf16.mxu0 0
      %614 = vmatpush2.bf16.msra.mxu0 0
      %615 = vmatprep.subr.bf16.mxu0 0
      %616 = vmatpush2.bf16.msra.mxu0 0
      %617 = vmatprep.subr.bf16.mxu0 0
      %618 = vmatpush2.bf16.msra.mxu0 0
      %619 = vmatprep.subr.bf16.mxu0 0
      %620 = vmatpush2.bf16.msra.mxu0 0
      %621 = vmatprep.subr.bf16.mxu0 0
      %622 = vmatpush2.bf16.msra.mxu0 0
      %623 = vmatprep.mubr.bf16.mxu0 0
      %624 = vmatmul.mubr.bf16.gmra.mxu0 %v357
      %v625 = vpop.f32.mrf.mxu0
      %v626 = vadd.f32 %v585, %v625
      %v627 = vpop.f32.mrf.mxu0
      %v628 = vpop.f32.mrf.mxu0
      %v629 = vadd.f32 %v588, %v628
      %v630 = vpop.f32.mrf.mxu0
      %631 = vdwg.mxu0
      %632 = vst.msk [vmem:[%s170] sm:$0xff] %vm197, %v626
      %633 = vst.msk [vmem:[%s170 + $0x8] sm:$0xff] %vm197, %v629
      %p634 = scmp.lt.s32.totalorder %s14, 1
      %s635 = scalar_select %p634, %s14, 1
      %s636 = smul.addr %s635, 2
      %s637 = smul.addr %s636, 8
      %s638 = scalar_lea.vmem %s3, %s637
      // Predicated region
      $region33: #{resblock_pallas.1} parent=31 // pred_check
        %p639 = pneg %p100
      $region34: #{resblock_pallas.1} parent=31 // pred_check_branch
        %641 = sbr.rel (%p639) target = $region36
      $region35: #{resblock_pallas.1} parent=31 // pred_region
        _
      $region36: #{resblock_pallas.1} parent=31 // pred_fallthru
        _
    $region32: #{resblock_pallas.1} parent=5 // pred_fallthru
      _
    %p642 = scmp.le.s32.totalorder 2, %s9
    // Predicated region
    $region37: #{resblock_pallas.1} parent=5 // pred_check
      %p643 = pneg %p642
    $region38: #{resblock_pallas.1} parent=5 // pred_check_branch
      %645 = sbr.rel (%p643) target = $region40
    $region39: #{resblock_pallas.1} parent=5 // pred_region
      %s646 = ssub.s32 %s9, 2
      // Predicated region
      $region41: #{resblock_pallas.1} parent=39 // pred_check
        %p647 = pneg %p106
      $region42: #{resblock_pallas.1} parent=39 // pred_check_branch
        %649 = sbr.rel (%p647) target = $region44
      $region43: #{resblock_pallas.1} parent=39 // pred_region
        %p650 = scmp.lt.s32.totalorder %s15, 1
        %s651 = scalar_select %p650, %s15, 1
        %s652 = smul.addr %s651, 2
        %s653 = smul.addr %s652, 8
        %s654 = scalar_lea.vmem %s3, %s653
      $region44: #{resblock_pallas.1} parent=39 // pred_fallthru
        _
    $region40: #{resblock_pallas.1} parent=5 // pred_fallthru
      _
  $region6: #{resblock_pallas.1} parent=0 // loop_footer
    %s13 = sadd.s32 1, %s9
  $region7: #{resblock_pallas.1} parent=0 // loop_footer_branch
    %8 = sbr.rel target = $region3
  $region8: #{resblock_pallas.1} parent=0 // loop_exit
    _

</llo_original>
